<compile_context>
chip_gen: v7x
topology: tpu7x:2x2x1
jax: 0.10.0
libtpu: 0.0.40
codegen_flags: <defaults>
</compile_context>

<pallas_src>
import jax
import jax.numpy as jnp
from jax.experimental import pallas as pl
from jax.experimental.pallas import tpu as pltpu

P_DROP = 0.5
_KEEP_THRESHOLD = int(round((1.0 - P_DROP) * float(2 ** 32)))  # 2**31 for p=0.5
_SCALE = 1.0 / (1.0 - P_DROP)

_MAX_BM = 512    # sublane-dim block cap (multiple of 8)
_MAX_BN = 1024   # lane-dim block cap (multiple of 128)


def _splitmix32(x):
    """Cheap uint32 -> uint32 mixer; pure VPU/scalar integer work."""
    x = x + jnp.uint32(0x9E3779B9)
    x = x ^ (x >> 16)
    x = x * jnp.uint32(0x85EBCA6B)
    x = x ^ (x >> 13)
    x = x * jnp.uint32(0xC2B2AE35)
    x = x ^ (x >> 16)
    return x


def _make_dropout_kernel(bm, bn, n_cols):
    def kernel(seed_ref, x_ref, o_ref):
        i = pl.program_id(0)
        j = pl.program_id(1)
        # Global element index of each entry in this block (PRNG counter),
        # so different blocks never replay the same random pattern.
        row = jax.lax.broadcasted_iota(jnp.int32, (bm, bn), 0) + i * bm
        col = jax.lax.broadcasted_iota(jnp.int32, (bm, bn), 1) + j * bn
        idx = row.astype(jnp.uint32) * jnp.uint32(n_cols) + col.astype(jnp.uint32)
        seed_u = _splitmix32(seed_ref[0].astype(jnp.uint32))        # scalar mix
        bits = _splitmix32(idx + seed_u)                            # per-element bits
        keep = bits < jnp.uint32(_KEEP_THRESHOLD)                   # integer threshold
        o_ref[...] = jnp.where(keep, x_ref[...] * _SCALE, 0.0).astype(o_ref.dtype)

    return kernel


@jax.jit
def dropout_pallas(x, seed):
    orig_shape = x.shape
    n = orig_shape[-1] if x.ndim >= 1 else 1
    m = max(x.size // max(n, 1), 1)
    x2d = x.reshape(m, n)

    # Block sizes: full dim if small (allowed even when not (8,128)-aligned),
    # otherwise large aligned blocks.  (in+out) double-buffered stays well
    # under the 32 MiB scoped-VMEM default, incl. v7x's 64 MiB physical VMEM.
    bm = m if m <= _MAX_BM else _MAX_BM
    bn = n if n <= _MAX_BN else _MAX_BN
    grid = (pl.cdiv(m, bm), pl.cdiv(n, bn))

    seed_arr = jnp.asarray(seed, dtype=jnp.int32).reshape(1)

    out2d = pl.pallas_call(
        _make_dropout_kernel(bm, bn, n),
        out_shape=jax.ShapeDtypeStruct((m, n), x.dtype),
        grid=grid,
        in_specs=[
            pl.BlockSpec(memory_space=pltpu.MemorySpace.SMEM),  # seed scalar
            pl.BlockSpec((bm, bn), lambda i, j: (i, j)),        # x tile
        ],
        out_specs=pl.BlockSpec((bm, bn), lambda i, j: (i, j)),
        input_output_aliases={1: 0},  # x2d is an internal temp; reuse its buffer
        compiler_params=pltpu.CompilerParams(
            dimension_semantics=("parallel", "parallel")),
    )(seed_arr, x2d)

    return out2d.reshape(orig_shape)


if __name__ == "__main__":
    key = jax.random.PRNGKey(0)

    # Shape matching the module's example input: torch.randn(1, 2, 2)
    x = jax.random.normal(key, (1, 2, 2), dtype=jnp.float32)
    y = jax.block_until_ready(dropout_pallas(x, 0))
    scaled = x * _SCALE
    ok = jnp.all(jnp.isclose(y, 0.0) | jnp.isclose(y, scaled))
    assert bool(ok), "dropout output must be 0 or 2*x elementwise"

    # Exercise the multi-block grid path (3x2 grid of (512,1024) blocks).
    x_big = jax.random.normal(jax.random.PRNGKey(1), (2, 520, 1152),
                              dtype=jnp.float32)
    y_big = jax.block_until_ready(dropout_pallas(x_big, 7))
    scaled_big = x_big * _SCALE
    ok_big = jnp.all(jnp.isclose(y_big, 0.0) | jnp.isclose(y_big, scaled_big))
    assert bool(ok_big), "tiled dropout output must be 0 or 2*x elementwise"
    keep_frac = jnp.mean((y_big != 0.0).astype(jnp.float32))
    assert 0.4 < float(keep_frac) < 0.6, "keep fraction should be ~0.5"

    print("KERNEL_OK")
</pallas_src>

<mosaic_0001>
module attributes {stable_mosaic.version = 11 : i64} {
  func.func @kernel(%arg0: i32, %arg1: i32, %arg2: memref<1xi32, #tpu.memory_space<smem>>, %arg3: memref<2x2xf32, #tpu.memory_space<vmem>>, %arg4: memref<2x2xf32, #tpu.memory_space<vmem>>) attributes {dimension_semantics = [#tpu.dimension_semantics<parallel>, #tpu.dimension_semantics<parallel>], iteration_bounds = array<i64: 1, 1>, scalar_prefetch = 0 : i64, scratch_operands = 0 : i64, tpu.core_type = #tpu.core_type<tc>, window_params = [{transform_indices = @transform_0, window_bounds = array<i64: 1>}, {transform_indices = @transform_1, window_bounds = array<i64: 2, 2>}, {transform_indices = @transform_2, window_bounds = array<i64: 2, 2>}]} {
    %0 = tpu.iota {dimensions = array<i32: 0>} : vector<2x2xi32>
    %c2_i32 = arith.constant 2 : i32
    %1 = arith.muli %arg0, %c2_i32 : i32
    %2 = vector.broadcast %1 : i32 to vector<2x2xi32>
    %3 = arith.addi %0, %2 : vector<2x2xi32>
    %4 = tpu.iota {dimensions = array<i32: 1>} : vector<2x2xi32>
    %c2_i32_0 = arith.constant 2 : i32
    %5 = arith.muli %arg1, %c2_i32_0 : i32
    %6 = vector.broadcast %5 : i32 to vector<2x2xi32>
    %7 = arith.addi %4, %6 : vector<2x2xi32>
    %c2_i32_1 = arith.constant 2 : i32
    %8 = vector.broadcast %c2_i32_1 : i32 to vector<2x2xi32>
    %9 = arith.muli %3, %8 : vector<2x2xi32>
    %10 = arith.addi %9, %7 : vector<2x2xi32>
    %c0 = arith.constant 0 : index
    %11 = memref.load %arg2[%c0] : memref<1xi32, #tpu.memory_space<smem>>
    %c-1640531527_i32 = arith.constant -1640531527 : i32
    %12 = arith.addi %11, %c-1640531527_i32 : i32
    %c16_i32 = arith.constant 16 : i32
    %13 = arith.shrui %12, %c16_i32 : i32
    %14 = arith.xori %12, %13 : i32
    %c-2048144789_i32 = arith.constant -2048144789 : i32
    %15 = arith.muli %14, %c-2048144789_i32 : i32
    %c13_i32 = arith.constant 13 : i32
    %16 = arith.shrui %15, %c13_i32 : i32
    %17 = arith.xori %15, %16 : i32
    %c-1028477387_i32 = arith.constant -1028477387 : i32
    %18 = arith.muli %17, %c-1028477387_i32 : i32
    %c16_i32_2 = arith.constant 16 : i32
    %19 = arith.shrui %18, %c16_i32_2 : i32
    %20 = arith.xori %18, %19 : i32
    %21 = vector.broadcast %20 : i32 to vector<2x2xi32>
    %22 = arith.addi %10, %21 : vector<2x2xi32>
    %c-1640531527_i32_3 = arith.constant -1640531527 : i32
    %23 = vector.broadcast %c-1640531527_i32_3 : i32 to vector<2x2xi32>
    %24 = arith.addi %22, %23 : vector<2x2xi32>
    %c16_i32_4 = arith.constant 16 : i32
    %25 = vector.broadcast %c16_i32_4 : i32 to vector<2x2xi32>
    %26 = arith.shrui %24, %25 : vector<2x2xi32>
    %27 = arith.xori %24, %26 : vector<2x2xi32>
    %c-2048144789_i32_5 = arith.constant -2048144789 : i32
    %28 = vector.broadcast %c-2048144789_i32_5 : i32 to vector<2x2xi32>
    %29 = arith.muli %27, %28 : vector<2x2xi32>
    %c13_i32_6 = arith.constant 13 : i32
    %30 = vector.broadcast %c13_i32_6 : i32 to vector<2x2xi32>
    %31 = arith.shrui %29, %30 : vector<2x2xi32>
    %32 = arith.xori %29, %31 : vector<2x2xi32>
    %c-1028477387_i32_7 = arith.constant -1028477387 : i32
    %33 = vector.broadcast %c-1028477387_i32_7 : i32 to vector<2x2xi32>
    %34 = arith.muli %32, %33 : vector<2x2xi32>
    %c16_i32_8 = arith.constant 16 : i32
    %35 = vector.broadcast %c16_i32_8 : i32 to vector<2x2xi32>
    %36 = arith.shrui %34, %35 : vector<2x2xi32>
    %37 = arith.xori %34, %36 : vector<2x2xi32>
    %c-2147483648_i32 = arith.constant -2147483648 : i32
    %38 = vector.broadcast %c-2147483648_i32 : i32 to vector<2x2xi32>
    %39 = arith.cmpi ult, %37, %38 : vector<2x2xi32>
    %c0_9 = arith.constant 0 : index
    %c0_10 = arith.constant 0 : index
    %40 = vector.load %arg3[%c0_9, %c0_10] : memref<2x2xf32, #tpu.memory_space<vmem>>, vector<2x2xf32>
    %cst = arith.constant 2.000000e+00 : f32
    %41 = vector.broadcast %cst : f32 to vector<2x2xf32>
    %42 = arith.mulf %40, %41 : vector<2x2xf32>
    %cst_11 = arith.constant 0.000000e+00 : f32
    %43 = vector.broadcast %cst_11 : f32 to vector<2x2xf32>
    %44 = arith.select %39, %42, %43 : vector<2x2xi1>, vector<2x2xf32>
    %c0_12 = arith.constant 0 : index
    %c0_13 = arith.constant 0 : index
    %45 = vector.load %arg4[%c0_12, %c0_13] : memref<2x2xf32, #tpu.memory_space<vmem>>, vector<2x2xf32>
    tpu.vector_store %arg4[%c0_12, %c0_13], %44 {strides = array<i32>} : memref<2x2xf32, #tpu.memory_space<vmem>>, vector<2x2xf32>,
    return
  }
  func.func @transform_0(%arg0: i32, %arg1: i32) -> i32 {
    %c0_i32 = arith.constant 0 : i32
    %c0_i32_0 = arith.constant 0 : i32
    return %c0_i32 : i32
  }
  func.func @transform_1(%arg0: i32, %arg1: i32) -> (i32, i32) {
    %c0_i32 = arith.constant 0 : i32
    return %arg0, %arg1 : i32, i32
  }
  func.func @transform_2(%arg0: i32, %arg1: i32) -> (i32, i32) {
    %c0_i32 = arith.constant 0 : i32
    return %arg0, %arg1 : i32, i32
  }
}

</mosaic_0001>

<llo_original>
// kernel: dropout_pallas.1
$region0: #{dropout_pallas.1}
  #allocation0 [shape = 'u32[]', space=smem, size = 0x4, offset = 0x4, fixed_abs, tag = 'smem constant byte address 0x4 - core index']
  #allocation1 [shape = 'u32[144,128]{1,0:T(1,128)}', space=vmem, size = 0x12000, scoped, tag = 'internal scratch']
  #allocation2 [shape = 's32[1]{0:T(128)S(6)}', space=smem, size = 0x200, scoped, tag = 'scoped memory for dropout_pallas.1']
  %s0 = inlined_call_operand.<no memory space> [shape: s32[1], index: 0, kind: input, shape index: {}]
  %s1 = inlined_call_operand.vmem [shape: f32[2,2], index: 1, kind: input, shape index: {}, may-alias: {1,2}]
  %s2 = inlined_call_operand.vmem [shape: f32[2,2], index: 2, kind: output, shape index: {}, may-alias: {1,2}]
  %s3 = sld [smem:[#allocation0]]
  $region18: #{dropout_pallas.1} parent=0
    _
  %s5 = ssub.s32 1, %s3
  %s6 = scalar_select 0, %s5, %s3
  %7 = sst [smem:[#allocation2]] %s0
  // Predicated region
  $region2: #{dropout_pallas.1} parent=0 // pred_check
    _
  $region3: #{dropout_pallas.1} parent=0 // pred_check_branch
    %9 = sbr.rel (0) target = $region5
  $region4: #{dropout_pallas.1} parent=0 // pred_region
    _
  $region5: #{dropout_pallas.1} parent=0 // pred_fallthru
    _
  // Predicated region
  $region6: #{dropout_pallas.1} parent=0 // pred_check
    _
  $region7: #{dropout_pallas.1} parent=0 // pred_check_branch
    %11 = sbr.rel (0) target = $region9
  $region8: #{dropout_pallas.1} parent=0 // pred_region
    _
  $region9: #{dropout_pallas.1} parent=0 // pred_fallthru
    _
  %v12 = vlaneseq
  %v13 = vshrl.u32 %v12, 7
  %s14 = smul.u32 0, 2
  %v15 = vstv %s14
  %v16 = vadd.s32 %v13, %v15
  %v17 = vlaneseq
  %v18 = vand.u32 %v17, 127
  %s19 = smul.u32 0, 2
  %v20 = vstv %s19
  %v21 = vadd.s32 %v18, %v20
  %v22 = vmul.u32 %v16, 2
  %v23 = vadd.s32 %v22, %v21
  %s24 = sld [smem:[#allocation2]]
  %s25 = sadd.s32 %s24, 2654435769
  %s26 = sshrl.u32 %s25, 16
  %s27 = sxor.u32 %s25, %s26
  %s28 = smul.u32 %s27, 2246822507
  %s29 = sshrl.u32 %s28, 13
  %s30 = sxor.u32 %s28, %s29
  %s31 = smul.u32 %s30, 3266489909
  %s32 = sshrl.u32 %s31, 16
  %s33 = sxor.u32 %s31, %s32
  %v34 = vstv %s33
  %v35 = vadd.s32 %v23, %v34
  %v36 = vadd.s32 %v35, 2654435769
  %v37 = vshrl.u32 %v36, 16
  %v38 = vxor.u32 %v36, %v37
  %v39 = vmul.u32 %v38, 2246822507
  %v40 = vshrl.u32 %v39, 13
  %v41 = vxor.u32 %v39, %v40
  %v42 = vmul.u32 %v41, 3266489909
  %v43 = vshrl.u32 %v42, 16
  %v44 = vxor.u32 %v42, %v43
  %vm45 = vcmp.lt.u32.totalorder %v44, 2147483648
  %v46 = vld [vmem:[%s1] sm:$0x3]
  %v47 = vmul.f32 %v46, 2.0
  %v48 = vsel %vm45, %v47, 0.0
  %vm49 = vcmask 9216
  %50 = vst.msk [vmem:[%s2] sm:$0x3] %vm49, %v48
  // Predicated region
  $region10: #{dropout_pallas.1} parent=0 // pred_check
    _
  $region11: #{dropout_pallas.1} parent=0 // pred_check_branch
    %52 = sbr.rel (0) target = $region13
  $region12: #{dropout_pallas.1} parent=0 // pred_region
    _
  $region13: #{dropout_pallas.1} parent=0 // pred_fallthru
    _
  // Predicated region
  $region14: #{dropout_pallas.1} parent=0 // pred_check
    _
  $region15: #{dropout_pallas.1} parent=0 // pred_check_branch
    %54 = sbr.rel (0) target = $region17
  $region16: #{dropout_pallas.1} parent=0 // pred_region
    _
  $region17: #{dropout_pallas.1} parent=0 // pred_fallthru
    _

</llo_original>
